<compile_context>
chip_gen: v6e
topology: v6e:2x2x1
jax: 0.10.0
libtpu: 0.0.40
codegen_flags: <defaults>
</compile_context>

<pallas_src>
import jax
import jax.numpy as jnp
from jax.experimental import pallas as pl
from jax.experimental.pallas import tpu as pltpu


def _fused_linear_add_gather_relu_kernel(i1_ref, i2_ref, x1_ref, x2_ref,
                                         w_ref, b_ref, o_ref):
    # i1_ref, i2_ref : SMEM (G,) int32 scalar-prefetch refs (consumed only by
    #                  the index_maps; unused in the body).
    # x1_ref : VMEM (Cin,  D1) -- x1[i1[g], :, i2[g], :]^T gathered by the DMA
    # x2_ref : VMEM (Cout, D1) -- x2[i1[g], :, i2[g], :]^T gathered by the DMA
    # w_ref  : VMEM (Cout, Cin)
    # b_ref  : VMEM (Cout, 1)
    # o_ref  : VMEM (Cout, D1)
    del i1_ref, i2_ref

    x1g = x1_ref[...]                        # (Cin, D1)
    w = w_ref[...]                           # (Cout, Cin)
    acc = x2_ref[...] + b_ref[...]           # (Cout, D1); bias bcast over lanes

    # Unrolled K=3 contraction on the VPU (MXU would be <1% utilized here).
    cin = x1g.shape[0]
    for k in range(cin):                     # static unroll, Cin=3
        acc = acc + w[:, k:k + 1] * x1g[k:k + 1, :]

    o_ref[...] = jnp.maximum(acc, 0.0)


def model_forward(x1, x2, i1, i2, weight, bias):
    """Mirrors Model.forward with channels-last inputs:
         v1 = linear(x1); v2 = v1 + x2; v3 = v2[i1, :, i2]; v4 = relu(v3)
       x1: (B, D1, D2, Cin), x2: (B, D1, D2, Cout).  Returns (G, D1, Cout)."""
    B, D1, D2, Cin = x1.shape
    Cout = weight.shape[0]

    # Advanced-index broadcasting (numpy/torch rules) + negative-index
    # normalization (no runtime OOB checks inside the kernel).
    i1b, i2b = jnp.broadcast_arrays(jnp.asarray(i1), jnp.asarray(i2))
    i1n = jnp.where(i1b < 0, i1b + B, i1b).astype(jnp.int32)
    i2n = jnp.where(i2b < 0, i2b + D2, i2b).astype(jnp.int32)
    G = i1n.shape[0]

    # Lane-dense layout: D1 on lanes, channels on sublanes, gathered axes first.
    x1_t = jnp.transpose(x1, (0, 2, 3, 1)).astype(jnp.float32)  # (B, D2, Cin,  D1)
    x2_t = jnp.transpose(x2, (0, 2, 3, 1)).astype(jnp.float32)  # (B, D2, Cout, D1)

    w = weight.astype(jnp.float32)                   # (Cout, Cin)
    b2 = bias.reshape(Cout, 1).astype(jnp.float32)   # (Cout, 1)

    grid_spec = pltpu.PrefetchScalarGridSpec(
        num_scalar_prefetch=2,                       # i1, i2 land in SMEM
        grid=(G,),
        in_specs=[
            # DMA-level gather: only the (Cin, D1) / (Cout, D1) column selected
            # by (i1[g], i2[g]) is moved HBM->VMEM per step.
            pl.BlockSpec((None, None, Cin, D1),
                         lambda g, i1r, i2r: (i1r[g], i2r[g], 0, 0)),
            pl.BlockSpec((None, None, Cout, D1),
                         lambda g, i1r, i2r: (i1r[g], i2r[g], 0, 0)),
            pl.BlockSpec((Cout, Cin), lambda g, i1r, i2r: (0, 0)),
            pl.BlockSpec((Cout, 1), lambda g, i1r, i2r: (0, 0)),
        ],
        out_specs=pl.BlockSpec((None, Cout, D1), lambda g, i1r, i2r: (g, 0, 0)),
    )

    out_cd = pl.pallas_call(
        _fused_linear_add_gather_relu_kernel,
        out_shape=jax.ShapeDtypeStruct((G, Cout, D1), jnp.float32),
        grid_spec=grid_spec,
        compiler_params=pltpu.CompilerParams(
            dimension_semantics=("parallel",)),      # each g independent (v7x 2 TCs)
    )(i1n, i2n, x1_t, x2_t, w, b2)

    # Torch returns (G, D1, Cout); transpose back outside the kernel.
    return jnp.transpose(out_cd, (0, 2, 1))


if __name__ == "__main__":
    key = jax.random.PRNGKey(0)
    k_w, k_b, k_x1, k_x2 = jax.random.split(key, 4)

    Cin, Cout = 3, 8
    B, D1, D2 = 2, 64, 64

    # Deterministic parameter init (shapes match nn.Linear(3, 8)).
    bound = 1.0 / (Cin ** 0.5)
    weight = jax.random.uniform(k_w, (Cout, Cin), jnp.float32, -bound, bound)
    bias = jax.random.uniform(k_b, (Cout,), jnp.float32, -bound, bound)

    x1 = jax.random.normal(k_x1, (B, D1, D2, Cin), jnp.float32)
    x2 = jax.random.normal(k_x2, (B, D1, D2, Cout), jnp.float32)

    # Pure-JAX reference of the full forward pass.
    v2_ref = x1 @ weight.T + bias + x2                     # (B, D1, D2, Cout)

    # Case 1: the spec's indices.
    i1 = jnp.array([1], dtype=jnp.int32)
    i2 = jnp.array([2], dtype=jnp.int32)
    out = model_forward(x1, x2, i1, i2, weight, bias)
    jax.block_until_ready(out)
    ref = jnp.maximum(v2_ref[i1, :, i2], 0.0)
    assert out.shape == (1, D1, Cout), out.shape
    assert jnp.allclose(out, ref, atol=1e-5, rtol=1e-5)

    # Case 2: broadcasted + negative indices (torch advanced-indexing rules).
    i1 = jnp.array([-1, 0, 1], dtype=jnp.int32)
    i2 = jnp.array([5], dtype=jnp.int32)
    out = model_forward(x1, x2, i1, i2, weight, bias)
    jax.block_until_ready(out)
    ref = jnp.maximum(v2_ref[i1, :, i2], 0.0)
    assert out.shape == (3, D1, Cout), out.shape
    assert jnp.allclose(out, ref, atol=1e-5, rtol=1e-5)

    print("KERNEL_OK")
</pallas_src>

<mosaic_0001>
module attributes {stable_mosaic.version = 11 : i64} {
  func.func @_fused_linear_add_gather_relu_kernel(%arg0: i32, %arg1: memref<1xi32, #tpu.memory_space<smem>>, %arg2: memref<1xi32, #tpu.memory_space<smem>>, %arg3: memref<1x1x3x64xf32, #tpu.memory_space<vmem>>, %arg4: memref<1x1x8x64xf32, #tpu.memory_space<vmem>>, %arg5: memref<8x3xf32, #tpu.memory_space<vmem>>, %arg6: memref<8x1xf32, #tpu.memory_space<vmem>>, %arg7: memref<1x8x64xf32, #tpu.memory_space<vmem>>) attributes {dimension_semantics = [#tpu.dimension_semantics<parallel>], iteration_bounds = array<i64: 1>, scalar_prefetch = 2 : i64, scratch_operands = 0 : i64, tpu.core_type = #tpu.core_type<tc>, window_params = [{transform_indices = @transform_0, window_bounds = array<i64: 1, 1, 3, 64>}, {transform_indices = @transform_1, window_bounds = array<i64: 1, 1, 8, 64>}, {pipeline_mode = #tpu.pipeline_mode<synchronous>, transform_indices = @transform_2, window_bounds = array<i64: 8, 3>}, {pipeline_mode = #tpu.pipeline_mode<synchronous>, transform_indices = @transform_3, window_bounds = array<i64: 8, 1>}, {transform_indices = @transform_4, window_bounds = array<i64: 1, 8, 64>}]} {
    %c0 = arith.constant 0 : index
    %c0_0 = arith.constant 0 : index
    %c0_1 = arith.constant 0 : index
    %c0_2 = arith.constant 0 : index
    %0 = vector.load %arg3[%c0, %c0_0, %c0_1, %c0_2] : memref<1x1x3x64xf32, #tpu.memory_space<vmem>>, vector<1x1x3x64xf32>
    %1 = vector.shape_cast %0 : vector<1x1x3x64xf32> to vector<3x64xf32>
    %c0_3 = arith.constant 0 : index
    %c0_4 = arith.constant 0 : index
    %2 = vector.load %arg5[%c0_3, %c0_4] : memref<8x3xf32, #tpu.memory_space<vmem>>, vector<8x3xf32>
    %c0_5 = arith.constant 0 : index
    %c0_6 = arith.constant 0 : index
    %c0_7 = arith.constant 0 : index
    %c0_8 = arith.constant 0 : index
    %3 = vector.load %arg4[%c0_5, %c0_6, %c0_7, %c0_8] : memref<1x1x8x64xf32, #tpu.memory_space<vmem>>, vector<1x1x8x64xf32>
    %4 = vector.shape_cast %3 : vector<1x1x8x64xf32> to vector<8x64xf32>
    %c0_9 = arith.constant 0 : index
    %c0_10 = arith.constant 0 : index
    %5 = vector.load %arg6[%c0_9, %c0_10] : memref<8x1xf32, #tpu.memory_space<vmem>>, vector<8x1xf32>
    %6 = vector.broadcast %5 : vector<8x1xf32> to vector<8x64xf32>
    %7 = arith.addf %4, %6 : vector<8x64xf32>
    %8 = vector.extract_strided_slice %2 {offsets = [0, 0], sizes = [8, 1], strides = [1, 1]} : vector<8x3xf32> to vector<8x1xf32>
    %9 = vector.extract_strided_slice %1 {offsets = [0, 0], sizes = [1, 64], strides = [1, 1]} : vector<3x64xf32> to vector<1x64xf32>
    %10 = vector.broadcast %8 : vector<8x1xf32> to vector<8x64xf32>
    %11 = vector.broadcast %9 : vector<1x64xf32> to vector<8x64xf32>
    %12 = arith.mulf %10, %11 : vector<8x64xf32>
    %13 = arith.addf %7, %12 : vector<8x64xf32>
    %14 = vector.extract_strided_slice %2 {offsets = [0, 1], sizes = [8, 1], strides = [1, 1]} : vector<8x3xf32> to vector<8x1xf32>
    %15 = vector.extract_strided_slice %1 {offsets = [1, 0], sizes = [1, 64], strides = [1, 1]} : vector<3x64xf32> to vector<1x64xf32>
    %16 = vector.broadcast %14 : vector<8x1xf32> to vector<8x64xf32>
    %17 = vector.broadcast %15 : vector<1x64xf32> to vector<8x64xf32>
    %18 = arith.mulf %16, %17 : vector<8x64xf32>
    %19 = arith.addf %13, %18 : vector<8x64xf32>
    %20 = vector.extract_strided_slice %2 {offsets = [0, 2], sizes = [8, 1], strides = [1, 1]} : vector<8x3xf32> to vector<8x1xf32>
    %21 = vector.extract_strided_slice %1 {offsets = [2, 0], sizes = [1, 64], strides = [1, 1]} : vector<3x64xf32> to vector<1x64xf32>
    %22 = vector.broadcast %20 : vector<8x1xf32> to vector<8x64xf32>
    %23 = vector.broadcast %21 : vector<1x64xf32> to vector<8x64xf32>
    %24 = arith.mulf %22, %23 : vector<8x64xf32>
    %25 = arith.addf %19, %24 : vector<8x64xf32>
    %cst = arith.constant 0.000000e+00 : f32
    %26 = vector.broadcast %cst : f32 to vector<8x64xf32>
    %27 = arith.maximumf %25, %26 : vector<8x64xf32>
    %c0_11 = arith.constant 0 : index
    %c0_12 = arith.constant 0 : index
    %c0_13 = arith.constant 0 : index
    %28 = vector.load %arg7[%c0_11, %c0_12, %c0_13] : memref<1x8x64xf32, #tpu.memory_space<vmem>>, vector<1x8x64xf32>
    %29 = vector.shape_cast %28 : vector<1x8x64xf32> to vector<8x64xf32>
    %30 = vector.shape_cast %27 : vector<8x64xf32> to vector<1x8x64xf32>
    tpu.vector_store %arg7[%c0_11, %c0_12, %c0_13], %30 {strides = array<i32>} : memref<1x8x64xf32, #tpu.memory_space<vmem>>, vector<1x8x64xf32>,
    return
  }
  func.func @transform_0(%arg0: i32, %arg1: memref<1xi32, #tpu.memory_space<smem>>, %arg2: memref<1xi32, #tpu.memory_space<smem>>) -> (i32, i32, i32, i32) {
    %0 = arith.index_cast %arg0 : i32 to index
    %1 = memref.load %arg1[%0] : memref<1xi32, #tpu.memory_space<smem>>
    %2 = arith.index_cast %arg0 : i32 to index
    %3 = memref.load %arg2[%2] : memref<1xi32, #tpu.memory_space<smem>>
    %c0_i32 = arith.constant 0 : i32
    %c0_i32_0 = arith.constant 0 : i32
    %c0_i32_1 = arith.constant 0 : i32
    return %1, %3, %c0_i32, %c0_i32_0 : i32, i32, i32, i32
  }
  func.func @transform_1(%arg0: i32, %arg1: memref<1xi32, #tpu.memory_space<smem>>, %arg2: memref<1xi32, #tpu.memory_space<smem>>) -> (i32, i32, i32, i32) {
    %0 = arith.index_cast %arg0 : i32 to index
    %1 = memref.load %arg1[%0] : memref<1xi32, #tpu.memory_space<smem>>
    %2 = arith.index_cast %arg0 : i32 to index
    %3 = memref.load %arg2[%2] : memref<1xi32, #tpu.memory_space<smem>>
    %c0_i32 = arith.constant 0 : i32
    %c0_i32_0 = arith.constant 0 : i32
    %c0_i32_1 = arith.constant 0 : i32
    return %1, %3, %c0_i32, %c0_i32_0 : i32, i32, i32, i32
  }
  func.func @transform_2(%arg0: i32, %arg1: memref<1xi32, #tpu.memory_space<smem>>, %arg2: memref<1xi32, #tpu.memory_space<smem>>) -> (i32, i32) {
    %c0_i32 = arith.constant 0 : i32
    %c0_i32_0 = arith.constant 0 : i32
    %c0_i32_1 = arith.constant 0 : i32
    return %c0_i32, %c0_i32_0 : i32, i32
  }
  func.func @transform_3(%arg0: i32, %arg1: memref<1xi32, #tpu.memory_space<smem>>, %arg2: memref<1xi32, #tpu.memory_space<smem>>) -> (i32, i32) {
    %c0_i32 = arith.constant 0 : i32
    %c0_i32_0 = arith.constant 0 : i32
    %c0_i32_1 = arith.constant 0 : i32
    return %c0_i32, %c0_i32_0 : i32, i32
  }
  func.func @transform_4(%arg0: i32, %arg1: memref<1xi32, #tpu.memory_space<smem>>, %arg2: memref<1xi32, #tpu.memory_space<smem>>) -> (i32, i32, i32) {
    %c0_i32 = arith.constant 0 : i32
    %c0_i32_0 = arith.constant 0 : i32
    %c0_i32_1 = arith.constant 0 : i32
    return %arg0, %c0_i32, %c0_i32_0 : i32, i32, i32
  }
}

</mosaic_0001>

<llo_original>
// kernel: tpu_custom_call.1
$region0: #{tpu_custom_call.1}
  #allocation0 [shape = 'u32[]', space=smem, size = 0x4, offset = 0x4, fixed_abs, tag = 'smem constant byte address 0x4 - core index']
  #allocation1 [shape = 'u32[144,128]{1,0:T(1,128)}', space=vmem, size = 0x12000, scoped, tag = 'internal scratch']
  #allocation2 [shape = 's32[1]{0}', space=sflag, size = 0x4, scoped, tag = 'scoped memory for tpu_custom_call.1']
  #allocation3 [shape = 's32[1]{0:T(128)S(6)}', space=smem, size = 0x200, scoped, tag = 'prefetched SMEM operand 0']
  #allocation4 [shape = 's32[1]{0:T(128)S(6)}', space=smem, size = 0x200, scoped, tag = 'prefetched SMEM operand 1']
  %s0 = inlined_call_operand.<no memory space> [shape: s32[1], index: 0, kind: input, shape index: {}]
  %s1 = inlined_call_operand.<no memory space> [shape: s32[1], index: 1, kind: input, shape index: {}]
  %s2 = inlined_call_operand.vmem [shape: f32[2,64,3,64], index: 2, kind: input, shape index: {}]
  %s3 = inlined_call_operand.hbm [shape: f32[2,64,8,64], index: 3, kind: input, shape index: {}]
  %s4 = inlined_call_operand.vmem [shape: f32[8,3], index: 4, kind: input, shape index: {}]
  %s5 = inlined_call_operand.vmem [shape: f32[8,1], index: 5, kind: input, shape index: {}]
  %s6 = inlined_call_operand.hbm [shape: f32[1,8,64], index: 6, kind: output, shape index: {}]
  %s7 = sld [smem:[#allocation0]]
  $region30: #{tpu_custom_call.1} parent=0
    _
  %s9 = ssub.s32 1, %s7
  %s10 = scalar_select 0, %s9, %s7
  %11 = sst [smem:[#allocation3]] %s0
  %12 = sst [smem:[#allocation4]] %s1
  $region1: #{tpu_custom_call.1} parent=0
    #allocation5 [shape = 'u8[4096]{0}', space=vmem, size = 0x1000, scoped, tag = 'input window, operand 3, single buffered']
    #allocation6 [shape = 's32[1]{0}', space=sflag, size = 0x4, scoped, tag = 'scoped memory for tpu_custom_call.1']
    #allocation7 [shape = 's32[1]{0}', space=sflag, size = 0x4, scoped, tag = 'scoped memory for tpu_custom_call.1']
    #allocation8 [shape = 'u8[4096]{0}', space=vmem, size = 0x1000, scoped, tag = 'output window, operand 0, single buffered']
    %13 = vsyncpa [#allocation6], 0
    %14 = vsyncpa [#allocation7], 0
    // Predicated region
    $region2: #{tpu_custom_call.1} parent=1 // pred_check
      _
    $region3: #{tpu_custom_call.1} parent=1 // pred_check_branch
      %16 = sbr.rel (0) target = $region5
    $region4: #{tpu_custom_call.1} parent=1 // pred_region
      %s17 = sld [smem:[#allocation3]]
      %s18 = sld [smem:[#allocation4]]
      %p19 = scmp.lt.s32.totalorder %s17, 1
      %s20 = scalar_select %p19, %s17, 1
      %p21 = scmp.lt.s32.totalorder %s18, 63
      %s22 = scalar_select %p21, %s18, 63
      %s23 = smul.addr %s20, 64
      %s24 = sadd.s32 %s22, %s23
      %s25 = smul.addr %s24, 4
      %s26 = scalar_lea.vmem %s2, %s25
      %s27 = sld [smem:[#allocation3]]
      %s28 = sld [smem:[#allocation4]]
    $region5: #{tpu_custom_call.1} parent=1 // pred_fallthru
      _
    // Predicated region
    $region6: #{tpu_custom_call.1} parent=1 // pred_check
      _
    $region7: #{tpu_custom_call.1} parent=1 // pred_check_branch
      %30 = sbr.rel (0) target = $region9
    $region8: #{tpu_custom_call.1} parent=1 // pred_region
      %s31 = sld [smem:[#allocation3]]
      %s32 = sld [smem:[#allocation4]]
      %s34 = ssub.s32 128, 128
      %35 = vsyncadd [#allocation6], %s34
      %s36 = smul.addr %s31, 64
      %s37 = sadd.s32 %s32, %s36
      %s38 = smul.addr %s37, 128
      %s39 = scalar_lea.hbm %s3, %s38
      %s41 = sshll.u32 [#allocation5], 4
      %s42 = int_to_ptr.vmem [resolvable:$true] %s41
      %44 = dma.hbm_to_vmem [thread:$0]  %s39, 128, %s42, [#allocation6]
    $region9: #{tpu_custom_call.1} parent=1 // pred_fallthru
      _
    // Predicated region
    $region10: #{tpu_custom_call.1} parent=1 // pred_check
      _
    $region11: #{tpu_custom_call.1} parent=1 // pred_check_branch
      %46 = sbr.rel (0) target = $region13
    $region12: #{tpu_custom_call.1} parent=1 // pred_region
      _
    $region13: #{tpu_custom_call.1} parent=1 // pred_fallthru
      _
    // Predicated region
    $region14: #{tpu_custom_call.1} parent=1 // pred_check
      _
    $region15: #{tpu_custom_call.1} parent=1 // pred_check_branch
      %48 = sbr.rel (0) target = $region17
    $region16: #{tpu_custom_call.1} parent=1 // pred_region
      _
    $region17: #{tpu_custom_call.1} parent=1 // pred_fallthru
      _
    // Predicated region
    $region18: #{tpu_custom_call.1} parent=1 // pred_check
      _
    $region19: #{tpu_custom_call.1} parent=1 // pred_check_branch
      %50 = sbr.rel (0) target = $region21
    $region20: #{tpu_custom_call.1} parent=1 // pred_region
      %51 = dma.done [#allocation6], 128
    $region21: #{tpu_custom_call.1} parent=1 // pred_fallthru
      _
    %s52 = sld [smem:[#allocation3]]
    %s53 = sld [smem:[#allocation4]]
    %p54 = scmp.lt.s32.totalorder %s52, 1
    %s55 = scalar_select %p54, %s52, 1
    %p56 = scmp.lt.s32.totalorder %s53, 63
    %s57 = scalar_select %p56, %s53, 63
    %s58 = smul.addr %s55, 64
    %s59 = sadd.s32 %s57, %s58
    %s60 = smul.addr %s59, 4
    %s61 = scalar_lea.vmem %s2, %s60
    %s62 = sld [smem:[#allocation3]]
    %s63 = sld [smem:[#allocation4]]
    %p64 = scmp.lt.s32.totalorder %s62, 1
    %s65 = scalar_select %p64, %s62, 1
    %p66 = scmp.lt.s32.totalorder %s63, 63
    %s67 = scalar_select %p66, %s63, 63
    %s68 = smul.addr %s65, 64
    %s69 = sadd.s32 %s67, %s68
    %s70 = smul.addr %s69, 4
    %s71 = scalar_lea.vmem %s2, %s70
    %s72 = sld [smem:[#allocation3]]
    %s73 = sld [smem:[#allocation4]]
    %s74 = sld [smem:[#allocation3]]
    %s75 = sld [smem:[#allocation4]]
    %v76 = vld [vmem:[%s71] sm:$0x7]
    %v77 = vld [vmem:[%s4] sm:$0xff]
    %v78 = vld [vmem:[#allocation5] sm:$0xff]
    %v79 = vld [vmem:[%s5] sm:$0xff]
    %81 = vset.pattern.permute.xlu0 0
    %82 = vperm.xlu0 %81, %v79
    %v83 = vpop.permute.xlu0 %82
    %v85 = vadd.f32 %v78, %v83
    %87 = vset.pattern.permute.xlu0 0
    %88 = vperm.xlu0 %87, %v77
    %v89 = vpop.permute.xlu0 %88
    %v91 = vlaneseq
    %v92 = vshrl.u32 %v91, 7
    %v93 = vsub.s32 0, %v92
    %v94 = vrot.slane %v76, %v93
    %v95 = vmul.f32 %v89, %v94
    %v96 = vadd.f32 %v85, %v95
    %97 = vset.pattern.permute.xlu0 1
    %98 = vperm.xlu0 %97, %v77
    %v99 = vpop.permute.xlu0 %98
    %v101 = vlaneseq
    %v102 = vshrl.u32 %v101, 7
    %v103 = vsub.s32 1, %v102
    %v104 = vrot.slane %v76, %v103
    %v105 = vmul.f32 %v99, %v104
    %v106 = vadd.f32 %v96, %v105
    %107 = vset.pattern.permute.xlu0 2
    %108 = vperm.xlu0 %107, %v77
    %v109 = vpop.permute.xlu0 %108
    %v111 = vlaneseq
    %v112 = vshrl.u32 %v111, 7
    %v113 = vsub.s32 2, %v112
    %v114 = vrot.slane %v76, %v113
    %v115 = vmul.f32 %v109, %v114
    %v116 = vadd.f32 %v106, %v115
    %v117 = vmax.f32 %v116, 0.0
    %vm118 = vcmask 523264
    %119 = vst.msk [vmem:[#allocation8] sm:$0xff] %vm118, %v117
    // Predicated region
    $region22: #{tpu_custom_call.1} parent=1 // pred_check
      _
    $region23: #{tpu_custom_call.1} parent=1 // pred_check_branch
      %121 = sbr.rel (0) target = $region25
    $region24: #{tpu_custom_call.1} parent=1 // pred_region
      %s123 = ssub.s32 128, 128
      %124 = vsyncadd [#allocation7], %s123
      %s126 = sshll.u32 [#allocation8], 4
      %s127 = int_to_ptr.vmem [resolvable:$true] %s126
      %129 = dma.vmem_to_hbm [thread:$0]  %s127, 128, %s6, [#allocation7]
    $region25: #{tpu_custom_call.1} parent=1 // pred_fallthru
      _
    // Predicated region
    $region26: #{tpu_custom_call.1} parent=1 // pred_check
      _
    $region27: #{tpu_custom_call.1} parent=1 // pred_check_branch
      %131 = sbr.rel (0) target = $region29
    $region28: #{tpu_custom_call.1} parent=1 // pred_region
      %132 = dma.done [#allocation7], 128
    $region29: #{tpu_custom_call.1} parent=1 // pred_fallthru
      _
    %133 = vsyncpa [#allocation6], 1
    %134 = vsyncpa [#allocation7], 1

</llo_original>
